<compile_context>
chip_gen: v6e
topology: v6e:2x2x1
jax: 0.10.0
libtpu: 0.0.40
codegen_flags: <defaults>
</compile_context>

<pallas_src>
import functools
import math

import jax
import jax.numpy as jnp
from jax import lax
from jax.experimental import pallas as pl
from jax.experimental.pallas import tpu as pltpu


# ----------------------------- helpers --------------------------------------


def _round_up(x, m):
    return -(-x // m) * m


def _round_down(x, m):
    return (x // m) * m


def _lowest(dtype):
    dtype = jnp.dtype(dtype)
    if jnp.issubdtype(dtype, jnp.floating):
        return float("-inf")
    if jnp.issubdtype(dtype, jnp.integer):
        return int(jnp.iinfo(dtype).min)
    if dtype == jnp.bool_:
        return False
    return float("-inf")


@functools.lru_cache(maxsize=1)
def _vmem_budget():
    """(per-input-buffer byte budget, vmem_limit_bytes) for this chip generation."""
    try:
        vmem = int(pltpu.get_tpu_info().vmem_capacity_bytes)
    except Exception:
        vmem = 64 * 1024 * 1024  # conservative (v7x per-core VMEM)
    per_buffer = max(4 * 1024 * 1024, min(16 * 1024 * 1024, vmem // 8))
    limit = min(vmem * 3 // 4, 96 * 1024 * 1024)
    return per_buffer, limit


def _pick_tile(n, unit_bytes, budget, gran, cap=None, target_steps=8, prefer=None):
    """Tile size along a streamed ('parallel') axis.

    Multiple of `gran` (or the full axis if n <= gran), sized to the VMEM
    budget but also capped so the grid has >= target_steps steps when the
    problem is big enough (DMA/compute overlap + megacore sharding).
    """
    if n <= gran:
        return n
    t_budget = max(gran, _round_down(budget // max(unit_bytes, 1), gran))
    t_steps = max(gran, _round_up(-(-n // target_steps), gran))
    t = min(t_budget, t_steps)
    if prefer is not None:           # keep output stores lane-dense for medium n
        t = max(t, min(prefer, t_budget))
    if cap is not None:              # bound in-kernel relayout / vreg pressure
        t = min(t, max(gran, _round_down(cap, gran)))
    return max(gran, min(t, _round_down(n, gran)))


# ----------------------------- kernels --------------------------------------


def _rowmax_kernel(x_ref, o_ref, *, w_total, tile_w, lowest):
    """Generic last-axis max.

    x_ref: (tile_r, tile_w) block; grid = (row_tiles, w_tiles), w axis last and
    'arbitrary'.  o_ref: (1, 1, tile_r) lane-dense block, resident across the
    w axis (same output block index for every k) -> acts as the accumulator.
    """
    k = pl.program_id(1)

    @pl.when(k == 0)
    def _init():
        o_ref[...] = jnp.full(o_ref.shape, lowest, o_ref.dtype)

    x = x_ref[...]
    if w_total % tile_w != 0:  # static: mask the ragged last reduction tile
        valid = w_total - k * tile_w
        lane = lax.broadcasted_iota(jnp.int32, x.shape, dimension=1)
        x = jnp.where(lane < valid, x, lowest)

    part = jnp.max(x, axis=-1)                      # (tile_r,) lane-major
    part = part.reshape(1, 1, part.shape[0])        # leading unit dims are free
    o_ref[...] = jnp.maximum(o_ref[...], part)


def _packed_rowmax_kernel(x_ref, o_ref, *, n_seg, seg_w):
    """Lane-packed small-width max: each 128-lane row holds n_seg original rows.

    x_ref: (tile_r, 128).  o_ref: (1, n_seg, tile_r) -- one lane-dense row per
    segment, written directly (no concatenate -> no large live intermediates).
    The wrapper un-permutes (tile, seg, packed_row) -> original row order.
    """
    for j in range(n_seg):
        seg = x_ref[:, j * seg_w:(j + 1) * seg_w]
        o_ref[0, j, :] = jnp.max(seg, axis=-1)


def _midmax_kernel(x_ref, o_ref, *, red_total, tile_red, lowest):
    """Non-last-axis max (no HBM transpose): reduce the middle (sublane) axis.

    x_ref: (tile_p, tile_red, tile_post); grid = (pre_tiles, post_tiles,
    red_tiles) with red last / 'arbitrary'.  o_ref: (tile_p, tile_post),
    resident across the red axis -> accumulator.
    """
    k = pl.program_id(2)

    @pl.when(k == 0)
    def _init():
        o_ref[...] = jnp.full(o_ref.shape, lowest, o_ref.dtype)

    x = x_ref[...]
    if red_total % tile_red != 0:  # static: mask the ragged last red tile
        valid = red_total - k * tile_red
        ridx = lax.broadcasted_iota(jnp.int32, x.shape, dimension=1)
        x = jnp.where(ridx < valid, x, lowest)

    o_ref[...] = jnp.maximum(o_ref[...], jnp.max(x, axis=1))


# ----------------------------- drivers --------------------------------------


def _max_last_axis(x2d):
    rows, w = x2d.shape
    dtype = x2d.dtype
    itemsize = jnp.dtype(dtype).itemsize
    budget, vmem_limit = _vmem_budget()
    lowest = _lowest(dtype)

    if w == 1:
        return x2d[:, 0]

    # ---- lane-packed path: fold g = 128 // w rows into the 128-lane axis ----
    g = 128 // w if (1 < w < 128 and 128 % w == 0) else 1
    if g > 16:
        g = 1  # TODO(synk): roll-tree segmented reduce to cover w in {2, 4}
    main_rows = (rows // g) * g if g > 1 else 0

    if g > 1 and main_rows > 0:
        kr = main_rows // g                        # packed rows, 128 lanes wide
        xp = x2d[:main_rows].reshape(kr, g * w)    # free row-major reshape
        tile_r = _pick_tile(kr, 128 * itemsize, budget, gran=8, cap=2048,
                            prefer=128)
        nt = -(-kr // tile_r)

        out_p = pl.pallas_call(
            functools.partial(_packed_rowmax_kernel, n_seg=g, seg_w=w),
            out_shape=jax.ShapeDtypeStruct((nt, g, tile_r), dtype),
            grid_spec=pltpu.PrefetchScalarGridSpec(
                num_scalar_prefetch=0,
                grid=(nt,),
                in_specs=[pl.BlockSpec((tile_r, 128), lambda i: (i, 0))],
                out_specs=pl.BlockSpec((1, g, tile_r), lambda i: (i, 0, 0)),
            ),
            compiler_params=pltpu.CompilerParams(
                dimension_semantics=("parallel",),
                vmem_limit_bytes=vmem_limit,
            ),
            cost_estimate=pl.CostEstimate(
                flops=main_rows * w, transcendentals=0,
                bytes_accessed=(main_rows * w + main_rows) * itemsize),
        )(xp)

        # (tile, seg, packed_row) -> (tile, packed_row, seg) = original order.
        main_out = jnp.transpose(out_p, (0, 2, 1)).reshape(-1)[:main_rows]
        if main_rows < rows:
            # < g leftover rows: reduce directly instead of a second launch.
            tail_out = jnp.max(x2d[main_rows:], axis=-1)
            return jnp.concatenate([main_out, tail_out])
        return main_out

    # ---- generic path (w >= 128, or w not dividing 128) ---------------------
    if 128 * w * itemsize <= budget:
        tile_w = w
    else:  # wide reduction axis: tile it and accumulate into the output block
        tile_w = max(128, _round_down(budget // (128 * itemsize), 128))
    tile_r = _pick_tile(rows, tile_w * itemsize, budget, gran=128, cap=4096,
                        prefer=512)
    nt_r = -(-rows // tile_r)
    nt_w = -(-w // tile_w)

    out3 = pl.pallas_call(
        functools.partial(_rowmax_kernel, w_total=w, tile_w=tile_w,
                          lowest=lowest),
        out_shape=jax.ShapeDtypeStruct((nt_r, 1, tile_r), dtype),
        grid_spec=pltpu.PrefetchScalarGridSpec(
            num_scalar_prefetch=0,
            grid=(nt_r, nt_w),
            in_specs=[pl.BlockSpec((tile_r, tile_w), lambda i, k: (i, k))],
            out_specs=pl.BlockSpec((1, 1, tile_r), lambda i, k: (i, 0, 0)),
        ),
        compiler_params=pltpu.CompilerParams(
            dimension_semantics=("parallel", "arbitrary"),
            vmem_limit_bytes=vmem_limit,
        ),
        cost_estimate=pl.CostEstimate(
            flops=rows * w, transcendentals=0,
            bytes_accessed=(rows * w + rows) * itemsize),
    )(x2d)

    out = out3.reshape(-1)
    if out.shape[0] != rows:
        out = out[:rows]  # drop rows belonging to the padded last row tile
    return out


def _max_middle_axis(x3):
    pre, red, post = x3.shape
    dtype = x3.dtype
    itemsize = jnp.dtype(dtype).itemsize
    budget, vmem_limit = _vmem_budget()
    lowest = _lowest(dtype)

    if red == 1:
        return x3[:, 0, :]

    # Keep `post` (lanes) whole when possible, then `red`, then stream `pre`.
    # TODO(synk): lane-pack groups of output columns when post < 128.
    if post * 8 * 8 * itemsize <= budget:
        tile_post = post
    else:
        tile_post = max(128, _round_down(budget // (8 * 8 * itemsize), 128))
    if red * 8 * tile_post * itemsize <= budget:
        tile_red = red
    else:
        tile_red = max(8, _round_down(budget // (8 * tile_post * itemsize), 8))
    tile_p = _pick_tile(pre, tile_red * tile_post * itemsize, budget, gran=8,
                        cap=1024)
    if tile_p >= pre:
        tile_p = pre

    nt_p = -(-pre // tile_p)
    nt_post = -(-post // tile_post)
    nt_red = -(-red // tile_red)

    out = pl.pallas_call(
        functools.partial(_midmax_kernel, red_total=red, tile_red=tile_red,
                          lowest=lowest),
        out_shape=jax.ShapeDtypeStruct((pre, post), dtype),
        grid_spec=pltpu.PrefetchScalarGridSpec(
            num_scalar_prefetch=0,
            grid=(nt_p, nt_post, nt_red),
            in_specs=[pl.BlockSpec((tile_p, tile_red, tile_post),
                                   lambda i, j, k: (i, k, j))],
            out_specs=pl.BlockSpec((tile_p, tile_post), lambda i, j, k: (i, j)),
        ),
        compiler_params=pltpu.CompilerParams(
            dimension_semantics=("parallel", "parallel", "arbitrary"),
            vmem_limit_bytes=vmem_limit,
        ),
        cost_estimate=pl.CostEstimate(
            flops=pre * red * post, transcendentals=0,
            bytes_accessed=(pre * red * post + pre * post) * itemsize),
    )(x3)
    return out


def global_max_pool(x, dim: int = -1):
    """Equivalent of torch.max(x, dim=dim).values (values only, no indices)."""
    ndim = x.ndim
    d = dim % ndim
    out_shape = x.shape[:d] + x.shape[d + 1:]

    if x.shape[d] == 1:  # max over a size-1 axis is a squeeze
        return x.reshape(out_shape)

    if d == ndim - 1:
        w = x.shape[-1]
        rows = math.prod(x.shape[:-1])
        out = _max_last_axis(x.reshape(rows, w))
        return out.reshape(out_shape)

    # Non-last axis: view as (pre, red, post), reduce the middle (sublane)
    # axis in-kernel -- no HBM transpose.
    pre = math.prod(x.shape[:d])
    red = x.shape[d]
    post = math.prod(x.shape[d + 1:])
    out = _max_middle_axis(x.reshape(pre, red, post))
    return out.reshape(out_shape)


if __name__ == "__main__":
    key = jax.random.PRNGKey(0)
    k0, k1 = jax.random.split(key)

    # NCHW input, small shapes (batch=2, channels=4, spatial=16x16).
    x = jax.random.normal(k0, (2, 4, 16, 16), dtype=jnp.float32)

    # Default module behavior: dim = -1 (lane-packed last-axis path).
    out = jax.block_until_ready(global_max_pool(x, dim=-1))
    ref = jnp.max(x, axis=-1)
    assert out.shape == ref.shape, (out.shape, ref.shape)
    assert jnp.allclose(out, ref), "mismatch vs reference (dim=-1)"

    # Non-last-dim reduction (sublane-axis reduce, no HBM transpose).
    out1 = jax.block_until_ready(global_max_pool(x, dim=1))
    ref1 = jnp.max(x, axis=1)
    assert out1.shape == ref1.shape, (out1.shape, ref1.shape)
    assert jnp.allclose(out1, ref1), "mismatch vs reference (dim=1)"

    # Generic last-axis path (width >= 128, lane-dense output slab).
    x2 = jax.random.normal(k1, (2, 3, 160), dtype=jnp.float32)
    out2 = jax.block_until_ready(global_max_pool(x2, dim=-1))
    ref2 = jnp.max(x2, axis=-1)
    assert out2.shape == ref2.shape, (out2.shape, ref2.shape)
    assert jnp.allclose(out2, ref2), "mismatch vs reference (generic dim=-1)"

    print("KERNEL_OK")
</pallas_src>

<mosaic_0001>
module attributes {stable_mosaic.version = 11 : i64} {
  func.func @_packed_rowmax_kernel(%arg0: i32, %arg1: memref<16x128xf32, #tpu.memory_space<vmem>>, %arg2: memref<1x8x16xf32, #tpu.memory_space<vmem>>) attributes {dimension_semantics = [#tpu.dimension_semantics<parallel>], iteration_bounds = array<i64: 1>, scalar_prefetch = 0 : i64, scratch_operands = 0 : i64, tpu.core_type = #tpu.core_type<tc>, window_params = [{transform_indices = @transform_0, window_bounds = array<i64: 16, 128>}, {transform_indices = @transform_1, window_bounds = array<i64: 1, 8, 16>}]} {
    %c0 = arith.constant 0 : index
    %c0_0 = arith.constant 0 : index
    %0 = vector.load %arg1[%c0, %c0_0] : memref<16x128xf32, #tpu.memory_space<vmem>>, vector<16x16xf32>
    %cst = arith.constant dense<0xFF800000> : vector<16xf32>
    %1 = vector.multi_reduction <maximumf>, %0, %cst [1] : vector<16x16xf32> to vector<16xf32>
    %c0_1 = arith.constant 0 : index
    %c0_2 = arith.constant 0 : index
    %c0_3 = arith.constant 0 : index
    %2 = vector.load %arg2[%c0_1, %c0_2, %c0_3] : memref<1x8x16xf32, #tpu.memory_space<vmem>>, vector<1x1x16xf32>
    %3 = vector.shape_cast %2 : vector<1x1x16xf32> to vector<16xf32>
    %4 = vector.shape_cast %1 : vector<16xf32> to vector<1x1x16xf32>
    tpu.vector_store %arg2[%c0_1, %c0_2, %c0_3], %4 {strides = array<i32>} : memref<1x8x16xf32, #tpu.memory_space<vmem>>, vector<1x1x16xf32>,
    %c0_4 = arith.constant 0 : index
    %c16 = arith.constant 16 : index
    %5 = vector.load %arg1[%c0_4, %c16] : memref<16x128xf32, #tpu.memory_space<vmem>>, vector<16x16xf32>
    %cst_5 = arith.constant dense<0xFF800000> : vector<16xf32>
    %6 = vector.multi_reduction <maximumf>, %5, %cst_5 [1] : vector<16x16xf32> to vector<16xf32>
    %c0_6 = arith.constant 0 : index
    %c1 = arith.constant 1 : index
    %c0_7 = arith.constant 0 : index
    %7 = vector.load %arg2[%c0_6, %c1, %c0_7] : memref<1x8x16xf32, #tpu.memory_space<vmem>>, vector<1x1x16xf32>
    %8 = vector.shape_cast %7 : vector<1x1x16xf32> to vector<16xf32>
    %9 = vector.shape_cast %6 : vector<16xf32> to vector<1x1x16xf32>
    tpu.vector_store %arg2[%c0_6, %c1, %c0_7], %9 {strides = array<i32>} : memref<1x8x16xf32, #tpu.memory_space<vmem>>, vector<1x1x16xf32>,
    %c0_8 = arith.constant 0 : index
    %c32 = arith.constant 32 : index
    %10 = vector.load %arg1[%c0_8, %c32] : memref<16x128xf32, #tpu.memory_space<vmem>>, vector<16x16xf32>
    %cst_9 = arith.constant dense<0xFF800000> : vector<16xf32>
    %11 = vector.multi_reduction <maximumf>, %10, %cst_9 [1] : vector<16x16xf32> to vector<16xf32>
    %c0_10 = arith.constant 0 : index
    %c2 = arith.constant 2 : index
    %c0_11 = arith.constant 0 : index
    %12 = vector.load %arg2[%c0_10, %c2, %c0_11] : memref<1x8x16xf32, #tpu.memory_space<vmem>>, vector<1x1x16xf32>
    %13 = vector.shape_cast %12 : vector<1x1x16xf32> to vector<16xf32>
    %14 = vector.shape_cast %11 : vector<16xf32> to vector<1x1x16xf32>
    tpu.vector_store %arg2[%c0_10, %c2, %c0_11], %14 {strides = array<i32>} : memref<1x8x16xf32, #tpu.memory_space<vmem>>, vector<1x1x16xf32>,
    %c0_12 = arith.constant 0 : index
    %c48 = arith.constant 48 : index
    %15 = vector.load %arg1[%c0_12, %c48] : memref<16x128xf32, #tpu.memory_space<vmem>>, vector<16x16xf32>
    %cst_13 = arith.constant dense<0xFF800000> : vector<16xf32>
    %16 = vector.multi_reduction <maximumf>, %15, %cst_13 [1] : vector<16x16xf32> to vector<16xf32>
    %c0_14 = arith.constant 0 : index
    %c3 = arith.constant 3 : index
    %c0_15 = arith.constant 0 : index
    %17 = vector.load %arg2[%c0_14, %c3, %c0_15] : memref<1x8x16xf32, #tpu.memory_space<vmem>>, vector<1x1x16xf32>
    %18 = vector.shape_cast %17 : vector<1x1x16xf32> to vector<16xf32>
    %19 = vector.shape_cast %16 : vector<16xf32> to vector<1x1x16xf32>
    tpu.vector_store %arg2[%c0_14, %c3, %c0_15], %19 {strides = array<i32>} : memref<1x8x16xf32, #tpu.memory_space<vmem>>, vector<1x1x16xf32>,
    %c0_16 = arith.constant 0 : index
    %c64 = arith.constant 64 : index
    %20 = vector.load %arg1[%c0_16, %c64] : memref<16x128xf32, #tpu.memory_space<vmem>>, vector<16x16xf32>
    %cst_17 = arith.constant dense<0xFF800000> : vector<16xf32>
    %21 = vector.multi_reduction <maximumf>, %20, %cst_17 [1] : vector<16x16xf32> to vector<16xf32>
    %c0_18 = arith.constant 0 : index
    %c4 = arith.constant 4 : index
    %c0_19 = arith.constant 0 : index
    %22 = vector.load %arg2[%c0_18, %c4, %c0_19] : memref<1x8x16xf32, #tpu.memory_space<vmem>>, vector<1x1x16xf32>
    %23 = vector.shape_cast %22 : vector<1x1x16xf32> to vector<16xf32>
    %24 = vector.shape_cast %21 : vector<16xf32> to vector<1x1x16xf32>
    tpu.vector_store %arg2[%c0_18, %c4, %c0_19], %24 {strides = array<i32>} : memref<1x8x16xf32, #tpu.memory_space<vmem>>, vector<1x1x16xf32>,
    %c0_20 = arith.constant 0 : index
    %c80 = arith.constant 80 : index
    %25 = vector.load %arg1[%c0_20, %c80] : memref<16x128xf32, #tpu.memory_space<vmem>>, vector<16x16xf32>
    %cst_21 = arith.constant dense<0xFF800000> : vector<16xf32>
    %26 = vector.multi_reduction <maximumf>, %25, %cst_21 [1] : vector<16x16xf32> to vector<16xf32>
    %c0_22 = arith.constant 0 : index
    %c5 = arith.constant 5 : index
    %c0_23 = arith.constant 0 : index
    %27 = vector.load %arg2[%c0_22, %c5, %c0_23] : memref<1x8x16xf32, #tpu.memory_space<vmem>>, vector<1x1x16xf32>
    %28 = vector.shape_cast %27 : vector<1x1x16xf32> to vector<16xf32>
    %29 = vector.shape_cast %26 : vector<16xf32> to vector<1x1x16xf32>
    tpu.vector_store %arg2[%c0_22, %c5, %c0_23], %29 {strides = array<i32>} : memref<1x8x16xf32, #tpu.memory_space<vmem>>, vector<1x1x16xf32>,
    %c0_24 = arith.constant 0 : index
    %c96 = arith.constant 96 : index
    %30 = vector.load %arg1[%c0_24, %c96] : memref<16x128xf32, #tpu.memory_space<vmem>>, vector<16x16xf32>
    %cst_25 = arith.constant dense<0xFF800000> : vector<16xf32>
    %31 = vector.multi_reduction <maximumf>, %30, %cst_25 [1] : vector<16x16xf32> to vector<16xf32>
    %c0_26 = arith.constant 0 : index
    %c6 = arith.constant 6 : index
    %c0_27 = arith.constant 0 : index
    %32 = vector.load %arg2[%c0_26, %c6, %c0_27] : memref<1x8x16xf32, #tpu.memory_space<vmem>>, vector<1x1x16xf32>
    %33 = vector.shape_cast %32 : vector<1x1x16xf32> to vector<16xf32>
    %34 = vector.shape_cast %31 : vector<16xf32> to vector<1x1x16xf32>
    tpu.vector_store %arg2[%c0_26, %c6, %c0_27], %34 {strides = array<i32>} : memref<1x8x16xf32, #tpu.memory_space<vmem>>, vector<1x1x16xf32>,
    %c0_28 = arith.constant 0 : index
    %c112 = arith.constant 112 : index
    %35 = vector.load %arg1[%c0_28, %c112] : memref<16x128xf32, #tpu.memory_space<vmem>>, vector<16x16xf32>
    %cst_29 = arith.constant dense<0xFF800000> : vector<16xf32>
    %36 = vector.multi_reduction <maximumf>, %35, %cst_29 [1] : vector<16x16xf32> to vector<16xf32>
    %c0_30 = arith.constant 0 : index
    %c7 = arith.constant 7 : index
    %c0_31 = arith.constant 0 : index
    %37 = vector.load %arg2[%c0_30, %c7, %c0_31] : memref<1x8x16xf32, #tpu.memory_space<vmem>>, vector<1x1x16xf32>
    %38 = vector.shape_cast %37 : vector<1x1x16xf32> to vector<16xf32>
    %39 = vector.shape_cast %36 : vector<16xf32> to vector<1x1x16xf32>
    tpu.vector_store %arg2[%c0_30, %c7, %c0_31], %39 {strides = array<i32>} : memref<1x8x16xf32, #tpu.memory_space<vmem>>, vector<1x1x16xf32>,
    return
  }
  func.func @transform_0(%arg0: i32) -> (i32, i32) {
    %c0_i32 = arith.constant 0 : i32
    %c0_i32_0 = arith.constant 0 : i32
    return %arg0, %c0_i32 : i32, i32
  }
  func.func @transform_1(%arg0: i32) -> (i32, i32, i32) {
    %c0_i32 = arith.constant 0 : i32
    %c0_i32_0 = arith.constant 0 : i32
    %c0_i32_1 = arith.constant 0 : i32
    return %arg0, %c0_i32, %c0_i32_0 : i32, i32, i32
  }
}

</mosaic_0001>

<llo_original>
// kernel: tpu_custom_call.1
$region0: #{tpu_custom_call.1}
  #allocation0 [shape = 'u32[]', space=smem, size = 0x4, offset = 0x4, fixed_abs, tag = 'smem constant byte address 0x4 - core index']
  #allocation1 [shape = 'u32[144,128]{1,0:T(1,128)}', space=vmem, size = 0x12000, scoped, tag = 'internal scratch']
  %s0 = inlined_call_operand.hbm [shape: f32[16,128], index: 0, kind: input, shape index: {}]
  %s1 = inlined_call_operand.hbm [shape: f32[1,8,16], index: 1, kind: output, shape index: {}]
  %s2 = sld [smem:[#allocation0]]
  $region18: #{tpu_custom_call.1} parent=0
    _
  %s4 = ssub.s32 1, %s2
  %s5 = scalar_select 0, %s4, %s2
  $region1: #{tpu_custom_call.1} parent=0
    #allocation2 [shape = 'u8[8192]{0}', space=vmem, size = 0x2000, scoped, tag = 'input window, operand 0, single buffered']
    #allocation3 [shape = 's32[1]{0}', space=sflag, size = 0x4, scoped, tag = 'scoped memory for tpu_custom_call.1']
    #allocation4 [shape = 's32[1]{0}', space=sflag, size = 0x4, scoped, tag = 'scoped memory for tpu_custom_call.1']
    #allocation5 [shape = 'u8[4096]{0}', space=vmem, size = 0x1000, scoped, tag = 'output window, operand 0, single buffered']
    %6 = vsyncpa [#allocation3], 0
    %7 = vsyncpa [#allocation4], 0
    // Predicated region
    $region2: #{tpu_custom_call.1} parent=1 // pred_check
      _
    $region3: #{tpu_custom_call.1} parent=1 // pred_check_branch
      %9 = sbr.rel (0) target = $region5
    $region4: #{tpu_custom_call.1} parent=1 // pred_region
      %s11 = ssub.s32 256, 256
      %12 = vsyncadd [#allocation3], %s11
      %s13 = sshll.u32 [#allocation2], 4
      %s14 = int_to_ptr.vmem [resolvable:$true] %s13
      %19 = dma.hbm_to_vmem [thread:$0]  %s0, 256, %s14, [#allocation3], 128, 128, 8
    $region5: #{tpu_custom_call.1} parent=1 // pred_fallthru
      _
    // Predicated region
    $region6: #{tpu_custom_call.1} parent=1 // pred_check
      _
    $region7: #{tpu_custom_call.1} parent=1 // pred_check_branch
      %21 = sbr.rel (0) target = $region9
    $region8: #{tpu_custom_call.1} parent=1 // pred_region
      %22 = dma.done [#allocation3], 256
    $region9: #{tpu_custom_call.1} parent=1 // pred_fallthru
      _
    %v23 = vld [vmem:[#allocation2] sm:$0xff]
    %v24 = vld [vmem:[#allocation2 + $0x8] sm:$0xff]
    %vm25 = vcmask 130048
    %v26 = vsel %vm25, %v23, -inf
    %27 = vmax.xlane.f32.xlu0 %v26
    %v28 = vpop.xlane.xlu0 %27
    %v29 = vsel %vm25, %v24, -inf
    %30 = vmax.xlane.f32.xlu0 %v29
    %v31 = vpop.xlane.xlu0 %30
    %v34 = vlaneseq
    %v35 = vand.u32 %v34, 127
    %v36 = vlaneseq
    %v37 = vshrl.u32 %v36, 7
    %v38 = vsub.s32 %v35, %v37
    %v39 = vrot.slane %v28, %v38
    %v40 = vadd.s32 %v35, 4294967288
    %v41 = vlaneseq
    %v42 = vshrl.u32 %v41, 7
    %v43 = vsub.s32 %v40, %v42
    %v44 = vrot.slane %v31, %v43
    %vm45 = vcmask 130112
    %v46 = vsel %vm45, %v44, %v39
    %vm48 = vcmask 122880
    %49 = vst.msk [vmem:[#allocation5] sm:$0x1] %vm48, %v46
    %v50 = vld [vmem:[#allocation2] sm:$0xff]
    %v51 = vld [vmem:[#allocation2 + $0x8] sm:$0xff]
    %vm52 = vcmask 261248
    %v53 = vsel %vm52, %v50, -inf
    %54 = vmax.xlane.f32.xlu0 %v53
    %v55 = vpop.xlane.xlu0 %54
    %v56 = vsel %vm52, %v51, -inf
    %57 = vmax.xlane.f32.xlu0 %v56
    %v58 = vpop.xlane.xlu0 %57
    %v61 = vlaneseq
    %v62 = vshrl.u32 %v61, 7
    %v63 = vsub.s32 %v35, %v62
    %v64 = vrot.slane %v55, %v63
    %v65 = vlaneseq
    %v66 = vshrl.u32 %v65, 7
    %v67 = vsub.s32 %v40, %v66
    %v68 = vrot.slane %v58, %v67
    %v69 = vsel %vm45, %v68, %v64
    %71 = vst.msk [vmem:[#allocation5 + $0x1] sm:$0x1] %vm48, %v69
    %v72 = vld [vmem:[#allocation2] sm:$0xff]
    %v73 = vld [vmem:[#allocation2 + $0x8] sm:$0xff]
    %vm74 = vcmask 392448
    %v75 = vsel %vm74, %v72, -inf
    %76 = vmax.xlane.f32.xlu0 %v75
    %v77 = vpop.xlane.xlu0 %76
    %v78 = vsel %vm74, %v73, -inf
    %79 = vmax.xlane.f32.xlu0 %v78
    %v80 = vpop.xlane.xlu0 %79
    %v83 = vlaneseq
    %v84 = vshrl.u32 %v83, 7
    %v85 = vsub.s32 %v35, %v84
    %v86 = vrot.slane %v77, %v85
    %v87 = vlaneseq
    %v88 = vshrl.u32 %v87, 7
    %v89 = vsub.s32 %v40, %v88
    %v90 = vrot.slane %v80, %v89
    %v91 = vsel %vm45, %v90, %v86
    %93 = vst.msk [vmem:[#allocation5 + $0x2] sm:$0x1] %vm48, %v91
    %v94 = vld [vmem:[#allocation2] sm:$0xff]
    %v95 = vld [vmem:[#allocation2 + $0x8] sm:$0xff]
    %vm96 = vcmask 523648
    %v97 = vsel %vm96, %v94, -inf
    %98 = vmax.xlane.f32.xlu0 %v97
    %v99 = vpop.xlane.xlu0 %98
    %v100 = vsel %vm96, %v95, -inf
    %101 = vmax.xlane.f32.xlu0 %v100
    %v102 = vpop.xlane.xlu0 %101
    %v105 = vlaneseq
    %v106 = vshrl.u32 %v105, 7
    %v107 = vsub.s32 %v35, %v106
    %v108 = vrot.slane %v99, %v107
    %v109 = vlaneseq
    %v110 = vshrl.u32 %v109, 7
    %v111 = vsub.s32 %v40, %v110
    %v112 = vrot.slane %v102, %v111
    %v113 = vsel %vm45, %v112, %v108
    %115 = vst.msk [vmem:[#allocation5 + $0x3] sm:$0x1] %vm48, %v113
    %v116 = vld [vmem:[#allocation2] sm:$0xff]
    %v117 = vld [vmem:[#allocation2 + $0x8] sm:$0xff]
    %vm118 = vcmask 654848
    %v119 = vsel %vm118, %v116, -inf
    %120 = vmax.xlane.f32.xlu0 %v119
    %v121 = vpop.xlane.xlu0 %120
    %v122 = vsel %vm118, %v117, -inf
    %123 = vmax.xlane.f32.xlu0 %v122
    %v124 = vpop.xlane.xlu0 %123
    %v127 = vlaneseq
    %v128 = vshrl.u32 %v127, 7
    %v129 = vsub.s32 %v35, %v128
    %v130 = vrot.slane %v121, %v129
    %v131 = vlaneseq
    %v132 = vshrl.u32 %v131, 7
    %v133 = vsub.s32 %v40, %v132
    %v134 = vrot.slane %v124, %v133
    %v135 = vsel %vm45, %v134, %v130
    %137 = vst.msk [vmem:[#allocation5 + $0x4] sm:$0x1] %vm48, %v135
    %v138 = vld [vmem:[#allocation2] sm:$0xff]
    %v139 = vld [vmem:[#allocation2 + $0x8] sm:$0xff]
    %vm140 = vcmask 786048
    %v141 = vsel %vm140, %v138, -inf
    %142 = vmax.xlane.f32.xlu0 %v141
    %v143 = vpop.xlane.xlu0 %142
    %v144 = vsel %vm140, %v139, -inf
    %145 = vmax.xlane.f32.xlu0 %v144
    %v146 = vpop.xlane.xlu0 %145
    %v149 = vlaneseq
    %v150 = vshrl.u32 %v149, 7
    %v151 = vsub.s32 %v35, %v150
    %v152 = vrot.slane %v143, %v151
    %v153 = vlaneseq
    %v154 = vshrl.u32 %v153, 7
    %v155 = vsub.s32 %v40, %v154
    %v156 = vrot.slane %v146, %v155
    %v157 = vsel %vm45, %v156, %v152
    %159 = vst.msk [vmem:[#allocation5 + $0x5] sm:$0x1] %vm48, %v157
    %v160 = vld [vmem:[#allocation2] sm:$0xff]
    %v161 = vld [vmem:[#allocation2 + $0x8] sm:$0xff]
    %vm162 = vcmask 917248
    %v163 = vsel %vm162, %v160, -inf
    %164 = vmax.xlane.f32.xlu0 %v163
    %v165 = vpop.xlane.xlu0 %164
    %v166 = vsel %vm162, %v161, -inf
    %167 = vmax.xlane.f32.xlu0 %v166
    %v168 = vpop.xlane.xlu0 %167
    %v171 = vlaneseq
    %v172 = vshrl.u32 %v171, 7
    %v173 = vsub.s32 %v35, %v172
    %v174 = vrot.slane %v165, %v173
    %v175 = vlaneseq
    %v176 = vshrl.u32 %v175, 7
    %v177 = vsub.s32 %v40, %v176
    %v178 = vrot.slane %v168, %v177
    %v179 = vsel %vm45, %v178, %v174
    %181 = vst.msk [vmem:[#allocation5 + $0x6] sm:$0x1] %vm48, %v179
    %v182 = vld [vmem:[#allocation2] sm:$0xff]
    %v183 = vld [vmem:[#allocation2 + $0x8] sm:$0xff]
    %vm184 = vcmask 1048448
    %v185 = vsel %vm184, %v182, -inf
    %186 = vmax.xlane.f32.xlu0 %v185
    %v187 = vpop.xlane.xlu0 %186
    %v188 = vsel %vm184, %v183, -inf
    %189 = vmax.xlane.f32.xlu0 %v188
    %v190 = vpop.xlane.xlu0 %189
    %v193 = vlaneseq
    %v194 = vshrl.u32 %v193, 7
    %v195 = vsub.s32 %v35, %v194
    %v196 = vrot.slane %v187, %v195
    %v197 = vlaneseq
    %v198 = vshrl.u32 %v197, 7
    %v199 = vsub.s32 %v40, %v198
    %v200 = vrot.slane %v190, %v199
    %v201 = vsel %vm45, %v200, %v196
    %203 = vst.msk [vmem:[#allocation5 + $0x7] sm:$0x1] %vm48, %v201
    // Predicated region
    $region10: #{tpu_custom_call.1} parent=1 // pred_check
      _
    $region11: #{tpu_custom_call.1} parent=1 // pred_check_branch
      %205 = sbr.rel (0) target = $region13
    $region12: #{tpu_custom_call.1} parent=1 // pred_region
      %s207 = ssub.s32 128, 128
      %208 = vsyncadd [#allocation4], %s207
      %s210 = sshll.u32 [#allocation5], 4
      %s211 = int_to_ptr.vmem [resolvable:$true] %s210
      %213 = dma.vmem_to_hbm [thread:$0]  %s211, 128, %s1, [#allocation4]
    $region13: #{tpu_custom_call.1} parent=1 // pred_fallthru
      _
    // Predicated region
    $region14: #{tpu_custom_call.1} parent=1 // pred_check
      _
    $region15: #{tpu_custom_call.1} parent=1 // pred_check_branch
      %215 = sbr.rel (0) target = $region17
    $region16: #{tpu_custom_call.1} parent=1 // pred_region
      %216 = dma.done [#allocation4], 128
    $region17: #{tpu_custom_call.1} parent=1 // pred_fallthru
      _
    %217 = vsyncpa [#allocation3], 1
    %218 = vsyncpa [#allocation4], 1

</llo_original>
